<compile_context>
chip_gen: v5e
topology: v5e:2x2
jax: 0.10.0
libtpu: 0.0.40
codegen_flags: <defaults>
</compile_context>

<pallas_src>
import jax
import jax.numpy as jnp
from jax.experimental import pallas as pl
from jax.experimental.pallas import tpu as pltpu


# --------------------------------------------------------------------------- #
# Fused Conv1d + PReLU (+ optional GRU-layer-1 input projection) kernel
# --------------------------------------------------------------------------- #
def _make_conv_kernel(K, dil, tl, halo, cin, with_proj):
    def kernel(xc_ref, xh_ref, w_ref, b_ref, a_ref, *rest):
        if with_proj:
            pw_ref, pb_ref, o_ref, xbuf, sbuf = rest
        else:
            o_ref, xbuf, sbuf = rest

        # (Cin, tl + halo) window: current tile + 128-wide right halo block.
        xbuf[:, :tl] = xc_ref[0].astype(jnp.float32)
        xbuf[:, tl:] = xh_ref[0].astype(jnp.float32)

        # Fused im2col: stack the K shifted views into one (K*Cin, tl) operand so the
        # whole convolution is a single MXU dot with contraction depth K*Cin.
        for k in range(K):
            sbuf[k * cin:(k + 1) * cin, :] = xbuf[:, k * dil:k * dil + tl]

        y = jnp.dot(w_ref[...], sbuf[...].astype(jnp.bfloat16),
                    preferred_element_type=jnp.float32)
        y = y + b_ref[...]                                  # bias   (f32 epilogue)
        a = a_ref[...]
        y = jnp.where(y >= 0.0, y, a * y)                   # PReLU  (f32 epilogue)

        if with_proj:
            # Hoisted GRU layer-1 input projection: g = W_ih_l0 @ prelu + b_ih_l0.
            g = jnp.dot(pw_ref[...], y.astype(jnp.bfloat16),
                        preferred_element_type=jnp.float32) + pb_ref[...]
            o_ref[0] = g.astype(o_ref.dtype)
        else:
            o_ref[0] = y.astype(o_ref.dtype)

    return kernel


def conv1d_prelu(x, w, b, alpha, *, dil=1, stride=1, tl=512,
                 proj_w=None, proj_b=None):
    """PyTorch-semantics Conv1d(padding=(K-1)//2*dil) + bias + per-channel PReLU.

    Optionally fuses an extra (G, Cout) projection + bias into the epilogue (used to
    hoist the GRU layer-1 input projection out of the serial time loop).
    Returns (out_padded, L_out) with out_padded of length ceil(L_out/tl)*tl.
    """
    # TODO(synk): stride > 1 fast path (polyphase) not implemented; this Encoder is
    # instantiated with its default stride=1.
    assert stride == 1, "fused conv kernel supports stride=1 only"
    B, Cin, L = x.shape
    Cout, Cin2, K = w.shape
    assert Cin2 == Cin
    HALO = 128
    assert (K - 1) * dil <= HALO, "receptive field must fit the 128-wide halo block"
    assert tl % HALO == 0 and tl >= HALO

    pad = (K - 1) // 2 * dil
    L_out = L + 2 * pad - (K - 1) * dil            # == L for odd K
    nt = pl.cdiv(L_out, tl)
    Ltot = nt * tl + HALO                          # extra zero halo past the last tile
    xp = jnp.pad(x, ((0, 0), (0, 0), (pad, Ltot - L - pad))).astype(jnp.bfloat16)

    # Folded weight: (Cout, Cin, K) -> (Cout, K*Cin), row order [k major, c minor].
    w2 = jnp.transpose(w, (0, 2, 1)).reshape(Cout, K * Cin).astype(jnp.bfloat16)
    b2 = b.reshape(Cout, 1).astype(jnp.float32)
    a2 = alpha.reshape(Cout, 1).astype(jnp.float32)

    with_proj = proj_w is not None
    Co = proj_w.shape[0] if with_proj else Cout
    out_dtype = jnp.bfloat16 if with_proj else jnp.float32

    hb = tl // HALO
    in_specs = [
        pl.BlockSpec((1, Cin, tl), lambda bb, i: (bb, 0, i)),                       # tile
        pl.BlockSpec((1, Cin, HALO), lambda bb, i, hb=hb: (bb, 0, (i + 1) * hb)),   # halo
        pl.BlockSpec((Cout, K * Cin), lambda bb, i: (0, 0)),                        # VMEM-resident
        pl.BlockSpec((Cout, 1), lambda bb, i: (0, 0)),
        pl.BlockSpec((Cout, 1), lambda bb, i: (0, 0)),
    ]
    operands = [xp, xp, w2, b2, a2]
    if with_proj:
        operands += [proj_w.astype(jnp.bfloat16),
                     proj_b.reshape(Co, 1).astype(jnp.float32)]
        in_specs += [pl.BlockSpec((Co, Cout), lambda bb, i: (0, 0)),
                     pl.BlockSpec((Co, 1), lambda bb, i: (0, 0))]

    out = pl.pallas_call(
        _make_conv_kernel(K, dil, tl, HALO, Cin, with_proj),
        out_shape=jax.ShapeDtypeStruct((B, Co, nt * tl), out_dtype),
        grid=(B, nt),
        in_specs=in_specs,
        out_specs=pl.BlockSpec((1, Co, tl), lambda bb, i: (bb, 0, i)),
        scratch_shapes=[pltpu.VMEM((Cin, tl + HALO), jnp.float32),   # assembled window
                        pltpu.VMEM((K * Cin, tl), jnp.float32)],     # im2col operand
        compiler_params=pltpu.CompilerParams(
            dimension_semantics=("parallel", "parallel"),
            vmem_limit_bytes=32 * 1024 * 1024),
    )(*operands)
    return out, L_out


# --------------------------------------------------------------------------- #
# 2-layer GRU kernel: grid = (batch [parallel], time chunks [arbitrary]),
# h1/h2 carried in the fori_loop carry, 2 MXU dots per time step.
# --------------------------------------------------------------------------- #
def _make_gru_kernel(H, tt, t_valid):
    H3 = 3 * H

    def kernel(gx_ref, whh1_ref, bhh1_ref, wblk2_ref, bih2_ref, bhh2_ref,
               o_ref, gxs_ref, h1_ref, h2_ref):
        it = pl.program_id(1)

        @pl.when(it == 0)
        def _():
            h1_ref[...] = jnp.zeros_like(h1_ref)
            h2_ref[...] = jnp.zeros_like(h2_ref)

        # One aligned full-block cast per chunk: bf16 gate stream -> f32 scratch, so
        # every per-step read is a plain dynamic-sublane f32 load.
        gxs_ref[...] = gx_ref[...].astype(jnp.float32)

        # Hoist (tiny) weight/bias loads out of the serial loop.
        whh1 = whh1_ref[...]          # (H, 3H)  bf16
        wblk2 = wblk2_ref[...]        # (2H, 6H) bf16, block-diagonal [ih | hh]
        bhh1 = bhh1_ref[...]          # (1, 3H)  f32
        bih2 = bih2_ref[...]
        bhh2 = bhh2_ref[...]

        n_steps = jnp.minimum(tt, t_valid - it * tt)   # skip padded tail steps

        def step(t, carry):
            h1p, h2p = carry                                   # (1, H) f32 each
            gx = gxs_ref[pl.ds(t, 1), :]                       # (1, 3H) = W_ih x + b_ih

            # Layer 1 (input projection precomputed in the conv epilogue).
            hh1 = jnp.dot(h1p.astype(jnp.bfloat16), whh1,
                          preferred_element_type=jnp.float32) + bhh1
            r1 = jax.nn.sigmoid(gx[:, :H] + hh1[:, :H])
            z1 = jax.nn.sigmoid(gx[:, H:2 * H] + hh1[:, H:2 * H])
            n1 = jnp.tanh(gx[:, 2 * H:] + r1 * hh1[:, 2 * H:])
            h1n = (1.0 - z1) * n1 + z1 * h1p

            # Layer 2: one block-diagonal dot gives ih and hh parts separately
            # (needed for the n-gate r * (W_hn h + b_hn) term).
            cat = jnp.concatenate([h1n, h2p], axis=1).astype(jnp.bfloat16)  # (1, 2H)
            g2 = jnp.dot(cat, wblk2, preferred_element_type=jnp.float32)    # (1, 6H)
            ih2 = g2[:, :H3] + bih2
            hh2 = g2[:, H3:] + bhh2
            r2 = jax.nn.sigmoid(ih2[:, :H] + hh2[:, :H])
            z2 = jax.nn.sigmoid(ih2[:, H:2 * H] + hh2[:, H:2 * H])
            n2 = jnp.tanh(ih2[:, 2 * H:] + r2 * hh2[:, 2 * H:])
            h2n = (1.0 - z2) * n2 + z2 * h2p

            o_ref[pl.ds(t, 1), :] = h2n
            return (h1n, h2n)

        h1f, h2f = jax.lax.fori_loop(0, n_steps, step,
                                     (h1_ref[...], h2_ref[...]))
        h1_ref[...] = h1f                                     # carry across chunks
        h2_ref[...] = h2f

    return kernel


def gru2_forward(gconv, gru_p, H, t_valid, *, tt=512):
    """gconv: (B, 3H, Tp) bf16 = W_ih_l0 @ prelu(conv) + b_ih_l0 (hoisted projection).
    Returns the layer-2 hidden states as (B, t_valid, H) f32."""
    B, G, Tp = gconv.shape
    assert G == 3 * H
    assert Tp % tt == 0
    nt = Tp // tt

    # Tiny host-side layout change so per-step reads inside the recurrence are
    # dynamic-sublane (time-major) loads.
    gx = jnp.transpose(gconv, (0, 2, 1))                      # (B, Tp, 3H) bf16

    l0, l1 = gru_p
    whh1_t = jnp.transpose(l0['whh']).astype(jnp.bfloat16)    # (H, 3H)
    bhh1 = l0['bhh'].reshape(1, 3 * H).astype(jnp.float32)
    # Layer-2 block-diagonal weight: dot(concat[h1,h2], wblk2) = [W_ih_l1 h1 | W_hh_l1 h2].
    wblk2 = jnp.zeros((2 * H, 6 * H), jnp.float32)
    wblk2 = wblk2.at[:H, :3 * H].set(jnp.transpose(l1['wih']))
    wblk2 = wblk2.at[H:, 3 * H:].set(jnp.transpose(l1['whh']))
    wblk2 = wblk2.astype(jnp.bfloat16)
    bih2 = l1['bih'].reshape(1, 3 * H).astype(jnp.float32)
    bhh2 = l1['bhh'].reshape(1, 3 * H).astype(jnp.float32)

    y = pl.pallas_call(
        _make_gru_kernel(H, tt, t_valid),
        out_shape=jax.ShapeDtypeStruct((B, Tp, H), jnp.float32),
        grid=(B, nt),
        in_specs=[
            pl.BlockSpec((None, tt, 3 * H), lambda bb, i: (bb, i, 0)),
            pl.BlockSpec((H, 3 * H), lambda bb, i: (0, 0)),
            pl.BlockSpec((1, 3 * H), lambda bb, i: (0, 0)),
            pl.BlockSpec((2 * H, 6 * H), lambda bb, i: (0, 0)),
            pl.BlockSpec((1, 3 * H), lambda bb, i: (0, 0)),
            pl.BlockSpec((1, 3 * H), lambda bb, i: (0, 0)),
        ],
        out_specs=pl.BlockSpec((None, tt, H), lambda bb, i: (bb, i, 0)),
        scratch_shapes=[pltpu.VMEM((tt, 3 * H), jnp.float32),   # f32 gate stream
                        pltpu.VMEM((1, H), jnp.float32),        # h1 carry across chunks
                        pltpu.VMEM((1, H), jnp.float32)],       # h2 carry across chunks
        compiler_params=pltpu.CompilerParams(
            dimension_semantics=("parallel", "arbitrary"),
            vmem_limit_bytes=32 * 1024 * 1024),
    )(gx, whh1_t, bhh1, wblk2, bih2, bhh2)
    return y[:, :t_valid, :]


# --------------------------------------------------------------------------- #
# Encoder forward + parameter init
# --------------------------------------------------------------------------- #
def init_encoder_params(key, channels, mul=1, kernel=7, gru=False):
    def nxt():
        nonlocal key
        key, sub = jax.random.split(key)
        return sub

    def w(shape, scale=0.1):
        return scale * jax.random.normal(nxt(), shape, jnp.float32)

    out_c = channels + mul
    p = {
        'conv_w': w((out_c, channels, kernel)),
        'conv_b': w((out_c,), 0.05),
        # nn.PReLU(channels + mul): per-channel alpha, default init 0.25.
        'prelu_a': jnp.full((out_c,), 0.25, jnp.float32),
    }
    if gru:
        H = out_c
        p['gru'] = [dict(wih=w((3 * H, H)), whh=w((3 * H, H)),
                         bih=w((3 * H,), 0.05), bhh=w((3 * H,), 0.05))
                    for _ in range(2)]
    return p


def encoder_forward(x, p, *, dil=1, stride=1, gru=False, tl=512, tt=None):
    if tt is None:
        tt = tl
    if not gru:
        out, L_out = conv1d_prelu(x, p['conv_w'], p['conv_b'], p['prelu_a'],
                                  dil=dil, stride=stride, tl=tl)
        return out[:, :, :L_out]
    H = p['conv_w'].shape[0]
    l0 = p['gru'][0]
    # Conv + PReLU + (fused) GRU layer-1 input projection -> (B, 3H, Tp) bf16.
    gconv, L_out = conv1d_prelu(x, p['conv_w'], p['conv_b'], p['prelu_a'],
                                dil=dil, stride=stride, tl=tl,
                                proj_w=l0['wih'], proj_b=l0['bih'])
    y_btm = gru2_forward(gconv, p['gru'], H, L_out, tt=tt)    # (B, L, H)
    return jnp.transpose(y_btm, (0, 2, 1))                    # (B, H, L)


# --------------------------------------------------------------------------- #
# Plain-JAX f32 references (correctness checks)
# --------------------------------------------------------------------------- #
def _conv_prelu_reference(x, w, b, alpha, dil=1):
    K = w.shape[-1]
    pad = (K - 1) // 2 * dil
    L_out = x.shape[-1]
    xp = jnp.pad(x, ((0, 0), (0, 0), (pad, pad)))
    cols = jnp.stack([xp[:, :, k * dil:k * dil + L_out] for k in range(K)], axis=2)
    y = jnp.einsum('ock,bckl->bol', w, cols) + b[None, :, None]
    return jnp.where(y >= 0, y, alpha[None, :, None] * y)


def _gru_layer_ref(x_tbd, wih, whh, bih, bhh):
    H = whh.shape[1]

    def step(h, x_t):
        gi = x_t @ wih.T + bih
        gh = h @ whh.T + bhh
        r = jax.nn.sigmoid(gi[:, :H] + gh[:, :H])
        z = jax.nn.sigmoid(gi[:, H:2 * H] + gh[:, H:2 * H])
        n = jnp.tanh(gi[:, 2 * H:] + r * gh[:, 2 * H:])
        h = (1.0 - z) * n + z * h
        return h, h

    h0 = jnp.zeros((x_tbd.shape[1], H), jnp.float32)
    _, ys = jax.lax.scan(step, h0, x_tbd)
    return ys


def _encoder_gru_reference(x, p, dil=1):
    y = _conv_prelu_reference(x, p['conv_w'], p['conv_b'], p['prelu_a'], dil)
    xs = jnp.transpose(y, (2, 0, 1))                           # (T, B, H)
    l0, l1 = p['gru']
    h1 = _gru_layer_ref(xs, l0['wih'], l0['whh'], l0['bih'], l0['bhh'])
    h2 = _gru_layer_ref(h1, l1['wih'], l1['whh'], l1['bih'], l1['bhh'])
    return jnp.transpose(h2, (1, 2, 0))                        # (B, H, T)


# --------------------------------------------------------------------------- #
if __name__ == "__main__":
    key = jax.random.PRNGKey(0)
    key, kx = jax.random.split(key)

    B, channels, mul, L = 2, 8, 8, 512            # Cout = H = 16
    x = jax.random.normal(kx, (B, channels, L), jnp.float32)

    p_plain = init_encoder_params(jax.random.PRNGKey(1), channels, mul=mul, gru=False)
    p_gru = init_encoder_params(jax.random.PRNGKey(2), channels, mul=mul, gru=True)

    f_plain = jax.jit(lambda a: encoder_forward(a, p_plain, gru=False))
    f_gru = jax.jit(lambda a: encoder_forward(a, p_gru, gru=True))

    y_plain = jax.block_until_ready(f_plain(x))
    y_gru = jax.block_until_ready(f_gru(x))

    C = channels + mul
    assert y_plain.shape == (B, C, L), y_plain.shape
    assert y_gru.shape == (B, C, L), y_gru.shape
    assert bool(jnp.all(jnp.isfinite(y_plain)))
    assert bool(jnp.all(jnp.isfinite(y_gru)))

    # Numerical checks against plain-JAX f32 references (loose tolerance: the kernels
    # use bf16 dot operands / bf16 gate-stream storage with f32 accumulation).
    ref_plain = _conv_prelu_reference(x, p_plain['conv_w'], p_plain['conv_b'],
                                      p_plain['prelu_a'])
    assert float(jnp.max(jnp.abs(y_plain - ref_plain))) < 5e-2

    ref_gru = _encoder_gru_reference(x, p_gru)
    assert float(jnp.max(jnp.abs(y_gru - ref_gru))) < 1e-1

    print("KERNEL_OK")
</pallas_src>

<mosaic_0001>
module attributes {stable_mosaic.version = 11 : i64} {
  func.func @kernel(%arg0: i32, %arg1: i32, %arg2: memref<1x8x512xbf16, #tpu.memory_space<vmem>>, %arg3: memref<1x8x128xbf16, #tpu.memory_space<vmem>>, %arg4: memref<16x56xbf16, #tpu.memory_space<vmem>>, %arg5: memref<16x1xf32, #tpu.memory_space<vmem>>, %arg6: memref<16x1xf32, #tpu.memory_space<vmem>>, %arg7: memref<1x16x512xf32, #tpu.memory_space<vmem>>, %arg8: memref<8x640xf32, #tpu.memory_space<vmem>>, %arg9: memref<56x512xf32, #tpu.memory_space<vmem>>) attributes {dimension_semantics = [#tpu.dimension_semantics<parallel>, #tpu.dimension_semantics<parallel>], iteration_bounds = array<i64: 2, 1>, scalar_prefetch = 0 : i64, scratch_operands = 2 : i64, tpu.core_type = #tpu.core_type<tc>, window_params = [{transform_indices = @transform_0, window_bounds = array<i64: 1, 8, 512>}, {transform_indices = @transform_1, window_bounds = array<i64: 1, 8, 128>}, {pipeline_mode = #tpu.pipeline_mode<synchronous>, transform_indices = @transform_2, window_bounds = array<i64: 16, 56>}, {pipeline_mode = #tpu.pipeline_mode<synchronous>, transform_indices = @transform_3, window_bounds = array<i64: 16, 1>}, {pipeline_mode = #tpu.pipeline_mode<synchronous>, transform_indices = @transform_4, window_bounds = array<i64: 16, 1>}, {transform_indices = @transform_5, window_bounds = array<i64: 1, 16, 512>}]} {
    %c0 = arith.constant 0 : index
    %c0_0 = arith.constant 0 : index
    %c0_1 = arith.constant 0 : index
    %0 = vector.load %arg2[%c0, %c0_0, %c0_1] : memref<1x8x512xbf16, #tpu.memory_space<vmem>>, vector<1x8x512xbf16>
    %1 = vector.shape_cast %0 : vector<1x8x512xbf16> to vector<8x512xbf16>
    %2 = arith.extf %1 : vector<8x512xbf16> to vector<8x512xf32>
    %c0_2 = arith.constant 0 : index
    %c0_3 = arith.constant 0 : index
    %3 = vector.load %arg8[%c0_2, %c0_3] : memref<8x640xf32, #tpu.memory_space<vmem>>, vector<8x512xf32>
    tpu.vector_store %arg8[%c0_2, %c0_3], %2 {strides = array<i32>} : memref<8x640xf32, #tpu.memory_space<vmem>>, vector<8x512xf32>,
    %c0_4 = arith.constant 0 : index
    %c0_5 = arith.constant 0 : index
    %c0_6 = arith.constant 0 : index
    %4 = vector.load %arg3[%c0_4, %c0_5, %c0_6] : memref<1x8x128xbf16, #tpu.memory_space<vmem>>, vector<1x8x128xbf16>
    %5 = vector.shape_cast %4 : vector<1x8x128xbf16> to vector<8x128xbf16>
    %6 = arith.extf %5 : vector<8x128xbf16> to vector<8x128xf32>
    %c0_7 = arith.constant 0 : index
    %c512 = arith.constant 512 : index
    %7 = vector.load %arg8[%c0_7, %c512] : memref<8x640xf32, #tpu.memory_space<vmem>>, vector<8x128xf32>
    tpu.vector_store %arg8[%c0_7, %c512], %6 {strides = array<i32>} : memref<8x640xf32, #tpu.memory_space<vmem>>, vector<8x128xf32>,
    %c0_8 = arith.constant 0 : index
    %c0_9 = arith.constant 0 : index
    %8 = vector.load %arg8[%c0_8, %c0_9] : memref<8x640xf32, #tpu.memory_space<vmem>>, vector<8x512xf32>
    %c0_10 = arith.constant 0 : index
    %c0_11 = arith.constant 0 : index
    %9 = vector.load %arg9[%c0_10, %c0_11] : memref<56x512xf32, #tpu.memory_space<vmem>>, vector<8x512xf32>
    tpu.vector_store %arg9[%c0_10, %c0_11], %8 {strides = array<i32>} : memref<56x512xf32, #tpu.memory_space<vmem>>, vector<8x512xf32>,
    %c0_12 = arith.constant 0 : index
    %c1 = arith.constant 1 : index
    %10 = vector.load %arg8[%c0_12, %c1] : memref<8x640xf32, #tpu.memory_space<vmem>>, vector<8x512xf32>
    %c8 = arith.constant 8 : index
    %c0_13 = arith.constant 0 : index
    %11 = vector.load %arg9[%c8, %c0_13] : memref<56x512xf32, #tpu.memory_space<vmem>>, vector<8x512xf32>
    tpu.vector_store %arg9[%c8, %c0_13], %10 {strides = array<i32>} : memref<56x512xf32, #tpu.memory_space<vmem>>, vector<8x512xf32>,
    %c0_14 = arith.constant 0 : index
    %c2 = arith.constant 2 : index
    %12 = vector.load %arg8[%c0_14, %c2] : memref<8x640xf32, #tpu.memory_space<vmem>>, vector<8x512xf32>
    %c16 = arith.constant 16 : index
    %c0_15 = arith.constant 0 : index
    %13 = vector.load %arg9[%c16, %c0_15] : memref<56x512xf32, #tpu.memory_space<vmem>>, vector<8x512xf32>
    tpu.vector_store %arg9[%c16, %c0_15], %12 {strides = array<i32>} : memref<56x512xf32, #tpu.memory_space<vmem>>, vector<8x512xf32>,
    %c0_16 = arith.constant 0 : index
    %c3 = arith.constant 3 : index
    %14 = vector.load %arg8[%c0_16, %c3] : memref<8x640xf32, #tpu.memory_space<vmem>>, vector<8x512xf32>
    %c24 = arith.constant 24 : index
    %c0_17 = arith.constant 0 : index
    %15 = vector.load %arg9[%c24, %c0_17] : memref<56x512xf32, #tpu.memory_space<vmem>>, vector<8x512xf32>
    tpu.vector_store %arg9[%c24, %c0_17], %14 {strides = array<i32>} : memref<56x512xf32, #tpu.memory_space<vmem>>, vector<8x512xf32>,
    %c0_18 = arith.constant 0 : index
    %c4 = arith.constant 4 : index
    %16 = vector.load %arg8[%c0_18, %c4] : memref<8x640xf32, #tpu.memory_space<vmem>>, vector<8x512xf32>
    %c32 = arith.constant 32 : index
    %c0_19 = arith.constant 0 : index
    %17 = vector.load %arg9[%c32, %c0_19] : memref<56x512xf32, #tpu.memory_space<vmem>>, vector<8x512xf32>
    tpu.vector_store %arg9[%c32, %c0_19], %16 {strides = array<i32>} : memref<56x512xf32, #tpu.memory_space<vmem>>, vector<8x512xf32>,
    %c0_20 = arith.constant 0 : index
    %c5 = arith.constant 5 : index
    %18 = vector.load %arg8[%c0_20, %c5] : memref<8x640xf32, #tpu.memory_space<vmem>>, vector<8x512xf32>
    %c40 = arith.constant 40 : index
    %c0_21 = arith.constant 0 : index
    %19 = vector.load %arg9[%c40, %c0_21] : memref<56x512xf32, #tpu.memory_space<vmem>>, vector<8x512xf32>
    tpu.vector_store %arg9[%c40, %c0_21], %18 {strides = array<i32>} : memref<56x512xf32, #tpu.memory_space<vmem>>, vector<8x512xf32>,
    %c0_22 = arith.constant 0 : index
    %c6 = arith.constant 6 : index
    %20 = vector.load %arg8[%c0_22, %c6] : memref<8x640xf32, #tpu.memory_space<vmem>>, vector<8x512xf32>
    %c48 = arith.constant 48 : index
    %c0_23 = arith.constant 0 : index
    %21 = vector.load %arg9[%c48, %c0_23] : memref<56x512xf32, #tpu.memory_space<vmem>>, vector<8x512xf32>
    tpu.vector_store %arg9[%c48, %c0_23], %20 {strides = array<i32>} : memref<56x512xf32, #tpu.memory_space<vmem>>, vector<8x512xf32>,
    %c0_24 = arith.constant 0 : index
    %c0_25 = arith.constant 0 : index
    %22 = vector.load %arg4[%c0_24, %c0_25] : memref<16x56xbf16, #tpu.memory_space<vmem>>, vector<16x56xbf16>
    %c0_26 = arith.constant 0 : index
    %c0_27 = arith.constant 0 : index
    %23 = vector.load %arg9[%c0_26, %c0_27] : memref<56x512xf32, #tpu.memory_space<vmem>>, vector<56x512xf32>
    %24 = arith.truncf %23 : vector<56x512xf32> to vector<56x512xbf16>
    %cst = arith.constant dense<0.000000e+00> : vector<16x512xf32>
    %25 = tpu.matmul %22, %24, %cst {dimension_numbers = #tpu.dot_dimension_numbers<[1], [0], [0], [1], [0, 0, 1, 1], [], []>} : vector<16x56xbf16>, vector<56x512xbf16>, vector<16x512xf32> -> vector<16x512xf32>
    %c0_28 = arith.constant 0 : index
    %c0_29 = arith.constant 0 : index
    %26 = vector.load %arg5[%c0_28, %c0_29] : memref<16x1xf32, #tpu.memory_space<vmem>>, vector<16x1xf32>
    %27 = vector.broadcast %26 : vector<16x1xf32> to vector<16x512xf32>
    %28 = arith.addf %25, %27 : vector<16x512xf32>
    %c0_30 = arith.constant 0 : index
    %c0_31 = arith.constant 0 : index
    %29 = vector.load %arg6[%c0_30, %c0_31] : memref<16x1xf32, #tpu.memory_space<vmem>>, vector<16x1xf32>
    %cst_32 = arith.constant 0.000000e+00 : f32
    %30 = vector.broadcast %cst_32 : f32 to vector<16x512xf32>
    %31 = arith.cmpf oge, %28, %30 : vector<16x512xf32>
    %32 = vector.broadcast %29 : vector<16x1xf32> to vector<16x512xf32>
    %33 = arith.mulf %32, %28 : vector<16x512xf32>
    %34 = arith.select %31, %28, %33 : vector<16x512xi1>, vector<16x512xf32>
    %c0_33 = arith.constant 0 : index
    %c0_34 = arith.constant 0 : index
    %c0_35 = arith.constant 0 : index
    %35 = vector.load %arg7[%c0_33, %c0_34, %c0_35] : memref<1x16x512xf32, #tpu.memory_space<vmem>>, vector<1x16x512xf32>
    %36 = vector.shape_cast %35 : vector<1x16x512xf32> to vector<16x512xf32>
    %37 = vector.shape_cast %34 : vector<16x512xf32> to vector<1x16x512xf32>
    tpu.vector_store %arg7[%c0_33, %c0_34, %c0_35], %37 {strides = array<i32>} : memref<1x16x512xf32, #tpu.memory_space<vmem>>, vector<1x16x512xf32>,
    return
  }
  func.func @transform_0(%arg0: i32, %arg1: i32) -> (i32, i32, i32) {
    %c0_i32 = arith.constant 0 : i32
    %c0_i32_0 = arith.constant 0 : i32
    return %arg0, %c0_i32, %arg1 : i32, i32, i32
  }
  func.func @transform_1(%arg0: i32, %arg1: i32) -> (i32, i32, i32) {
    %c1_i32 = arith.constant 1 : i32
    %0 = arith.addi %arg1, %c1_i32 : i32
    %c4_i32 = arith.constant 4 : i32
    %1 = arith.muli %0, %c4_i32 : i32
    %c0_i32 = arith.constant 0 : i32
    %c0_i32_0 = arith.constant 0 : i32
    return %arg0, %c0_i32, %1 : i32, i32, i32
  }
  func.func @transform_2(%arg0: i32, %arg1: i32) -> (i32, i32) {
    %c0_i32 = arith.constant 0 : i32
    %c0_i32_0 = arith.constant 0 : i32
    %c0_i32_1 = arith.constant 0 : i32
    return %c0_i32, %c0_i32_0 : i32, i32
  }
  func.func @transform_3(%arg0: i32, %arg1: i32) -> (i32, i32) {
    %c0_i32 = arith.constant 0 : i32
    %c0_i32_0 = arith.constant 0 : i32
    %c0_i32_1 = arith.constant 0 : i32
    return %c0_i32, %c0_i32_0 : i32, i32
  }
  func.func @transform_4(%arg0: i32, %arg1: i32) -> (i32, i32) {
    %c0_i32 = arith.constant 0 : i32
    %c0_i32_0 = arith.constant 0 : i32
    %c0_i32_1 = arith.constant 0 : i32
    return %c0_i32, %c0_i32_0 : i32, i32
  }
  func.func @transform_5(%arg0: i32, %arg1: i32) -> (i32, i32, i32) {
    %c0_i32 = arith.constant 0 : i32
    %c0_i32_0 = arith.constant 0 : i32
    return %arg0, %c0_i32, %arg1 : i32, i32, i32
  }
}

</mosaic_0001>

<llo_original>
// kernel: _lambda_.1
$region0: #{_lambda_.1}
  #allocation0 [shape = 'u32[]', space=smem, size = 0x4, offset = 0x4, fixed_abs, tag = 'smem constant byte address 0x4 - core index']
  #allocation1 [shape = 'u32[72,128]{1,0:T(1,128)}', space=vmem, size = 0x9000, scoped, tag = 'internal scratch']
  #allocation2 [shape = 'f32[8,640]{1,0:T(8,128)}', space=vmem, size = 0x5000, scoped, tag = 'scratch operand']
  #allocation3 [shape = 'f32[56,512]{1,0:T(8,128)}', space=vmem, size = 0x1c000, scoped, tag = 'scratch operand']
  %s0 = inlined_call_operand.vmem [shape: bf16[2,8,640], index: 0, kind: input, shape index: {}, may-alias: {0,1}]
  %s1 = inlined_call_operand.vmem [shape: bf16[2,8,640], index: 1, kind: input, shape index: {}, may-alias: {0,1}]
  %s2 = inlined_call_operand.vmem [shape: bf16[16,56], index: 2, kind: input, shape index: {}]
  %s3 = inlined_call_operand.vmem [shape: f32[16,1], index: 3, kind: input, shape index: {}]
  %s4 = inlined_call_operand.vmem [shape: f32[16,1], index: 4, kind: input, shape index: {}]
  %s5 = inlined_call_operand.hbm [shape: f32[2,16,512], index: 5, kind: output, shape index: {}]
  %s6 = sld [smem:[#allocation0]]
  $region53: #{_lambda_.1} parent=0
    _
  %s8 = ssub.s32 1, %s6
  %s9 = scalar_select 0, %s8, %s6
  $region1: #{_lambda_.1} parent=0
    #allocation4 [shape = 'u8[65536]{0}', space=vmem, size = 0x10000, scoped, tag = 'output window, operand 0']
    #allocation5 [shape = 's32[2]{0}', space=sflag, size = 0x8, scoped, tag = 'scoped memory for _lambda_.1']
    %10 = vsyncpa [#allocation5], 0
    %s11 = scalar_lea.sflag [#allocation5], 1
    %12 = vsyncpa %s11, 0
    loop: start=0, step=1, limit=4
    $region2: #{_lambda_.1} parent=1 // loop_pre_header
      _
    $region3: #{_lambda_.1} parent=1 // loop_header
      %s14 = sphi 0, %s18
      %p15 = scmp.ge.s32.totalorder %s14, 4
      %s21 = sphi 0, %s33
      %s22 = sphi 0, %s29
      %s23 = sphi 0, %s21
      %s24 = sphi 0, %s22
      %s25 = sphi 0, %s23
      %s26 = sphi 0, %s24
      %s38 = sphi 0, %s40
      %s41 = sphi 0, %s38
      %s42 = sphi 0, %s41
      %s58 = sphi 0, %s42
      %s70 = sphi 0, %s72
      %s73 = sphi 0, %s70
      %s74 = sphi 0, %s73
      %s90 = sphi 0, %s74
      %s94 = sphi 0, %s94
      %s96 = sphi 0, %s94
      %s97 = sphi 0, %s96
      %s111 = sphi 0, %s97
      %s115 = sphi 0, %s115
      %s117 = sphi 0, %s115
      %s118 = sphi 0, %s117
      %s132 = sphi 0, %s118
      %s136 = sphi 0, %s136
      %s138 = sphi 0, %s136
      %s139 = sphi 0, %s138
      %s153 = sphi 0, %s139
      %s161 = sphi 0, %s163
      %s164 = sphi 0, %s161
      %s165 = sphi 0, %s164
      %s181 = sphi 0, %s165
    $region4: #{_lambda_.1} parent=1 // loop_header_branch
      %17 = sbr.rel (%p15) target = $region8
    $region5: #{_lambda_.1} parent=1 // loop_body
      %s19 = ssub.s32 %s14, 1
      %s20 = ssub.s32 %s14, 2
      %s27 = sadd.s32 1, %s22
      %p28 = scmp.ge.s32.totalorder %s27, 1
      %s29 = scalar_select %p28, 0, %s27
      %s30 = sadd.s32 1, %s21
      %s31 = scalar_select %p28, %s30, %s21
      %p32 = scmp.ge.s32.totalorder %s31, 2
      %s33 = scalar_select %p32, 0, %s31
      %s34 = ssub.s32 %s21, %s33
      %s35 = ssub.s32 %s22, %s29
      %s36 = sor.u32 %s34, %s35
      %p37 = scmp.eq.s32.totalorder %s36, 0
      %s39 = sadd.s32 %s38, 1
      %s40 = scalar_select %p37, %s38, %s39
      %p43 = pneg %p37
      %p44 = scmp.eq.s32.totalorder %s14, 1
      %p45 = por %p43, %p44
      %p46 = scmp.ne.s32.totalorder %s38, %s41
      %p47 = scmp.eq.s32.totalorder %s14, 0
      %p48 = por %p46, %p47
      %p49 = scmp.ne.s32.totalorder %s38, %s41
      %p50 = scmp.eq.s32.totalorder %s19, 1
      %p51 = por %p49, %p50
      %p52 = scmp.ne.s32.totalorder %s41, %s42
      %p53 = scmp.eq.s32.totalorder %s19, 0
      %p54 = por %p52, %p53
      %p55 = scmp.ne.s32.totalorder %s41, %s42
      %p56 = scmp.eq.s32.totalorder %s20, 1
      %p57 = por %p55, %p56
      %p59 = scmp.ne.s32.totalorder %s42, %s58
      %p60 = scmp.eq.s32.totalorder %s20, 0
      %p61 = por %p59, %p60
      %s62 = sadd.s32 %s22, 1
      %s63 = smul.u32 %s62, 4
      %s64 = sadd.s32 %s29, 1
      %s65 = smul.u32 %s64, 4
      %s66 = ssub.s32 %s21, %s33
      %s67 = ssub.s32 %s63, %s65
      %s68 = sor.u32 %s66, %s67
      %p69 = scmp.eq.s32.totalorder %s68, 0
      %s71 = sadd.s32 %s70, 1
      %s72 = scalar_select %p69, %s70, %s71
      %p75 = pneg %p69
      %p76 = scmp.eq.s32.totalorder %s14, 1
      %p77 = por %p75, %p76
      %p78 = scmp.ne.s32.totalorder %s70, %s73
      %p79 = scmp.eq.s32.totalorder %s14, 0
      %p80 = por %p78, %p79
      %p81 = scmp.ne.s32.totalorder %s70, %s73
      %p82 = scmp.eq.s32.totalorder %s19, 1
      %p83 = por %p81, %p82
      %p84 = scmp.ne.s32.totalorder %s73, %s74
      %p85 = scmp.eq.s32.totalorder %s19, 0
      %p86 = por %p84, %p85
      %p87 = scmp.ne.s32.totalorder %s73, %s74
      %p88 = scmp.eq.s32.totalorder %s20, 1
      %p89 = por %p87, %p88
      %p91 = scmp.ne.s32.totalorder %s74, %s90
      %p92 = scmp.eq.s32.totalorder %s20, 0
      %p93 = por %p91, %p92
      %s95 = sadd.s32 %s94, 1
      %p98 = scmp.eq.s32.totalorder %s14, 1
      %p99 = scmp.ne.s32.totalorder %s94, %s96
      %p100 = scmp.eq.s32.totalorder %s14, 0
      %p101 = por %p99, %p100
      %p102 = scmp.ne.s32.totalorder %s94, %s96
      %p103 = scmp.eq.s32.totalorder %s19, 1
      %p104 = por %p102, %p103
      %p105 = scmp.ne.s32.totalorder %s96, %s97
      %p106 = scmp.eq.s32.totalorder %s19, 0
      %p107 = por %p105, %p106
      %p108 = scmp.ne.s32.totalorder %s96, %s97
      %p109 = scmp.eq.s32.totalorder %s20, 1
      %p110 = por %p108, %p109
      %p112 = scmp.ne.s32.totalorder %s97, %s111
      %p113 = scmp.eq.s32.totalorder %s20, 0
      %p114 = por %p112, %p113
      %s116 = sadd.s32 %s115, 1
      %p119 = scmp.eq.s32.totalorder %s14, 1
      %p120 = scmp.ne.s32.totalorder %s115, %s117
      %p121 = scmp.eq.s32.totalorder %s14, 0
      %p122 = por %p120, %p121
      %p123 = scmp.ne.s32.totalorder %s115, %s117
      %p124 = scmp.eq.s32.totalorder %s19, 1
      %p125 = por %p123, %p124
      %p126 = scmp.ne.s32.totalorder %s117, %s118
      %p127 = scmp.eq.s32.totalorder %s19, 0
      %p128 = por %p126, %p127
      %p129 = scmp.ne.s32.totalorder %s117, %s118
      %p130 = scmp.eq.s32.totalorder %s20, 1
      %p131 = por %p129, %p130
      %p133 = scmp.ne.s32.totalorder %s118, %s132
      %p134 = scmp.eq.s32.totalorder %s20, 0
      %p135 = por %p133, %p134
      %s137 = sadd.s32 %s136, 1
      %p140 = scmp.eq.s32.totalorder %s14, 1
      %p141 = scmp.ne.s32.totalorder %s136, %s138
      %p142 = scmp.eq.s32.totalorder %s14, 0
      %p143 = por %p141, %p142
      %p144 = scmp.ne.s32.totalorder %s136, %s138
      %p145 = scmp.eq.s32.totalorder %s19, 1
      %p146 = por %p144, %p145
      %p147 = scmp.ne.s32.totalorder %s138, %s139
      %p148 = scmp.eq.s32.totalorder %s19, 0
      %p149 = por %p147, %p148
      %p150 = scmp.ne.s32.totalorder %s138, %s139
      %p151 = scmp.eq.s32.totalorder %s20, 1
      %p152 = por %p150, %p151
      %p154 = scmp.ne.s32.totalorder %s139, %s153
      %p155 = scmp.eq.s32.totalorder %s20, 0
      %p156 = por %p154, %p155
      %s157 = ssub.s32 %s21, %s33
      %s158 = ssub.s32 %s22, %s29
      %s159 = sor.u32 %s157, %s158
      %p160 = scmp.eq.s32.totalorder %s159, 0
      %s162 = sadd.s32 %s161, 1
      %s163 = scalar_select %p160, %s161, %s162
      %p166 = pneg %p160
      %p167 = scmp.eq.s32.totalorder %s14, 1
      %p168 = por %p166, %p167
      %p169 = scmp.ne.s32.totalorder %s161, %s164
      %p170 = scmp.eq.s32.totalorder %s14, 0
      %p171 = por %p169, %p170
      %p172 = scmp.ne.s32.totalorder %s161, %s164
      %p173 = scmp.eq.s32.totalorder %s19, 1
      %p174 = por %p172, %p173
      %p175 = scmp.ne.s32.totalorder %s164, %s165
      %p176 = scmp.eq.s32.totalorder %s19, 0
      %p177 = por %p175, %p176
      %p178 = scmp.ne.s32.totalorder %s164, %s165
      %p179 = scmp.eq.s32.totalorder %s20, 1
      %p180 = por %p178, %p179
      %p182 = scmp.ne.s32.totalorder %s165, %s181
      %p183 = scmp.eq.s32.totalorder %s20, 0
      %p184 = por %p182, %p183
      %p185 = scmp.le.s32.totalorder 1, %s14
      %p186 = scmp.lt.s32.totalorder %s14, 3
      %p187 = pnand %p185, %p186
      %p188 = pneg %p187
      // Predicated region
      $region9: #{_lambda_.1} parent=5 // pred_check
        _
      $region10: #{_lambda_.1} parent=5 // pred_check_branch
        %190 = sbr.rel (%p187) target = $region12
      $region11: #{_lambda_.1} parent=5 // pred_region
        %s191 = ssub.s32 %s14, 1
        // Predicated region
        $region13: #{_lambda_.1} parent=11 // pred_check
          %p192 = pneg %p107
        $region14: #{_lambda_.1} parent=11 // pred_check_branch
          %194 = sbr.rel (%p192) target = $region16
        $region15: #{_lambda_.1} parent=11 // pred_region
          _
        $region16: #{_lambda_.1} parent=11 // pred_fallthru
          _
        // Predicated region
        $region17: #{_lambda_.1} parent=11 // pred_check
          %p195 = pneg %p128
        $region18: #{_lambda_.1} parent=11 // pred_check_branch
          %197 = sbr.rel (%p195) target = $region20
        $region19: #{_lambda_.1} parent=11 // pred_region
          _
        $region20: #{_lambda_.1} parent=11 // pred_fallthru
          _
        // Predicated region
        $region21: #{_lambda_.1} parent=11 // pred_check
          %p198 = pneg %p149
        $region22: #{_lambda_.1} parent=11 // pred_check_branch
          %200 = sbr.rel (%p198) target = $region24
        $region23: #{_lambda_.1} parent=11 // pred_region
          _
        $region24: #{_lambda_.1} parent=11 // pred_fallthru
          _
      $region12: #{_lambda_.1} parent=5 // pred_fallthru
        _
      %p201 = scmp.lt.s32.totalorder %s14, 2
      // Predicated region
      $region25: #{_lambda_.1} parent=5 // pred_check
        %p202 = pneg %p201
      $region26: #{_lambda_.1} parent=5 // pred_check_branch
        %204 = sbr.rel (%p202) target = $region28
      $region27: #{_lambda_.1} parent=5 // pred_region
        // Predicated region
        $region29: #{_lambda_.1} parent=27 // pred_check
          %p205 = pneg %p48
        $region30: #{_lambda_.1} parent=27 // pred_check_branch
          %207 = sbr.rel (%p205) target = $region32
        $region31: #{_lambda_.1} parent=27 // pred_region
          %s208 = smul.u32 4, %s22
          %s209 = ssub.s32 5, %s208
          %p210 = scmp.lt.s32.totalorder %s209, 4
          %s211 = scalar_select %p210, %s209, 4
          %s212 = smul.u32 4, %s211
          %p213 = scmp.lt.s32.totalorder %s21, 1
          %s214 = scalar_select %p213, %s21, 1
          %p215 = scmp.lt.s32.totalorder %s208, 4
          %s216 = scalar_select %p215, %s208, 4
          %s217 = smul.addr %s214, 5
          %s218 = sadd.s32 %s216, %s217
          %s219 = smul.addr %s218, 4
          %s220 = scalar_lea.vmem %s0, %s219
          %s221 = smul.u32 4, %s22
          %s222 = ssub.s32 5, %s221
          %p223 = scmp.lt.s32.totalorder %s222, 4
          %s224 = scalar_select %p223, %s222, 4
          %s225 = smul.u32 4, %s224
        $region32: #{_lambda_.1} parent=27 // pred_fallthru
          _
        // Predicated region
        $region33: #{_lambda_.1} parent=27 // pred_check
          %p226 = pneg %p80
        $region34: #{_lambda_.1} parent=27 // pred_check_branch
          %228 = sbr.rel (%p226) target = $region36
        $region35: #{_lambda_.1} parent=27 // pred_region
          %s229 = sadd.s32 %s22, 1
          %s230 = smul.u32 %s229, 4
          %p231 = scmp.lt.s32.totalorder %s21, 1
          %s232 = scalar_select %p231, %s21, 1
          %p233 = scmp.lt.s32.totalorder %s230, 4
          %s234 = scalar_select %p233, %s230, 4
          %s235 = smul.addr %s232, 5
          %s236 = sadd.s32 %s234, %s235
          %s237 = smul.addr %s236, 4
          %s238 = scalar_lea.vmem %s1, %s237
          %s239 = sadd.s32 %s22, 1
          %s240 = smul.u32 %s239, 4
        $region36: #{_lambda_.1} parent=27 // pred_fallthru
          _
      $region28: #{_lambda_.1} parent=5 // pred_fallthru
        _
      %p241 = scmp.le.s32.totalorder 1, %s14
      %p242 = scmp.lt.s32.totalorder %s14, 3
      %p243 = pnand %p241, %p242
      %p244 = pneg %p243
      // Predicated region
      $region37: #{_lambda_.1} parent=5 // pred_check
        _
      $region38: #{_lambda_.1} parent=5 // pred_check_branch
        %246 = sbr.rel (%p243) target = $region40
      $region39: #{_lambda_.1} parent=5 // pred_region
        %s247 = ssub.s32 %s14, 1
        %s248 = smul.u32 4, %s24
        %s249 = ssub.s32 5, %s248
        %p250 = scmp.lt.s32.totalorder %s249, 4
        %s251 = scalar_select %p250, %s249, 4
        %s252 = smul.u32 4, %s251
        %p253 = scmp.lt.s32.totalorder %s23, 1
        %s254 = scalar_select %p253, %s23, 1
        %p255 = scmp.lt.s32.totalorder %s248, 4
        %s256 = scalar_select %p255, %s248, 4
        %s257 = smul.addr %s254, 5
        %s258 = sadd.s32 %s256, %s257
        %s259 = smul.addr %s258, 4
        %s260 = scalar_lea.vmem %s0, %s259
        %p261 = pneg %p54
        %p262 = pneg %p51
        %s263 = sadd.s32 %s24, 1
        %s264 = smul.u32 %s263, 4
        %p265 = scmp.lt.s32.totalorder %s23, 1
        %s266 = scalar_select %p265, %s23, 1
        %p267 = scmp.lt.s32.totalorder %s264, 4
        %s268 = scalar_select %p267, %s264, 4
        %s269 = smul.addr %s266, 5
        %s270 = sadd.s32 %s268, %s269
        %s271 = smul.addr %s270, 4
        %s272 = scalar_lea.vmem %s1, %s271
        %p273 = pneg %p86
        %p274 = pneg %p83
        %p275 = pneg %p107
        %p276 = pneg %p104
        %p277 = pneg %p128
        %p278 = pneg %p125
        %p279 = pneg %p149
        %p280 = pneg %p146
        %p281 = pneg %p177
        %p282 = pneg %p174
        %s283 = sand.u32 %s164, 1
        %s284 = scalar_lea.sflag [#allocation5], %s283
        %s285 = sand.u32 %s164, 1
        %s286 = smul.addr %s285, 64
        %s287 = scalar_lea.vmem [#allocation4], %s286
        %s288 = smul.u32 4, %s24
        %s289 = ssub.s32 5, %s288
        %p290 = scmp.lt.s32.totalorder %s289, 4
        %s291 = scalar_select %p290, %s289, 4
        %s292 = smul.u32 4, %s291
        %p293 = scmp.lt.s32.totalorder %s23, 1
        %s294 = scalar_select %p293, %s23, 1
        %p295 = scmp.lt.s32.totalorder %s288, 4
        %s296 = scalar_select %p295, %s288, 4
        %s297 = smul.addr %s294, 5
        %s298 = sadd.s32 %s296, %s297
        %s299 = smul.addr %s298, 4
        %s300 = scalar_lea.vmem %s0, %s299
        %s301 = smul.u32 4, %s24
        %s302 = ssub.s32 5, %s301
        %p303 = scmp.lt.s32.totalorder %s302, 4
        %s304 = scalar_select %p303, %s302, 4
        %s305 = smul.u32 4, %s304
        %s306 = sadd.s32 %s24, 1
        %s307 = smul.u32 %s306, 4
        %p308 = scmp.lt.s32.totalorder %s23, 1
        %s309 = scalar_select %p308, %s23, 1
        %p310 = scmp.lt.s32.totalorder %s307, 4
        %s311 = scalar_select %p310, %s307, 4
        %s312 = smul.addr %s309, 5
        %s313 = sadd.s32 %s311, %s312
        %s314 = smul.addr %s313, 4
        %s315 = scalar_lea.vmem %s1, %s314
        %s316 = sadd.s32 %s24, 1
        %s317 = smul.u32 %s316, 4
        %s318 = smul.u32 4, %s24
        %v320 = vld [vmem:[%s300] sm:$0xff]
        %v321 = vld [vmem:[%s300 + $0x8] sm:$0xff]
        %v322 = vunpack.c.l.bf16 %v320
        %v323 = vunpack.c.h.bf16 %v320
        %v324 = vunpack.c.l.bf16 %v321
        %v325 = vunpack.c.h.bf16 %v321
        %326 = vst [vmem:[#allocation2] sm:$0xff] %v322
        %327 = vst [vmem:[#allocation2 + $0x8] sm:$0xff] %v323
        %328 = vst [vmem:[#allocation2 + $0x10] sm:$0xff] %v324
        %329 = vst [vmem:[#allocation2 + $0x18] sm:$0xff] %v325
        %v330 = vld [vmem:[%s315] sm:$0xf]
        %v331 = vunpack.c.l.bf16 %v330
        %332 = vst [vmem:[#allocation2 + $0x20] sm:$0xff] %v331
        %v333 = vld [vmem:[#allocation2] sm:$0xff]
        %v334 = vld [vmem:[#allocation2 + $0x8] sm:$0xff]
        %v335 = vld [vmem:[#allocation2 + $0x10] sm:$0xff]
        %v336 = vld [vmem:[#allocation2 + $0x18] sm:$0xff]
        %337 = vst [vmem:[#allocation3] sm:$0xff] %v333
        %338 = vst [vmem:[#allocation3 + $0x8] sm:$0xff] %v334
        %339 = vst [vmem:[#allocation3 + $0x10] sm:$0xff] %v335
        %340 = vst [vmem:[#allocation3 + $0x18] sm:$0xff] %v336
        %v341 = vld [vmem:[#allocation2] sm:$0xff]
        %v342 = vld [vmem:[#allocation2 + $0x8] sm:$0xff]
        %v343 = vld [vmem:[#allocation2 + $0x10] sm:$0xff]
        %v344 = vld [vmem:[#allocation2 + $0x18] sm:$0xff]
        %v345 = vld [vmem:[#allocation2 + $0x20] sm:$0xff]
        %351 = vrot.lane.b32.xlu0 %v341, 127
        %v352 = vpop.permute.xlu0 %351
        %353 = vrot.lane.b32.xlu0 %v342, 127
        %v354 = vpop.permute.xlu0 %353
        %355 = vrot.lane.b32.xlu0 %v343, 127
        %v356 = vpop.permute.xlu0 %355
        %357 = vrot.lane.b32.xlu0 %v344, 127
        %v358 = vpop.permute.xlu0 %357
        %359 = vrot.lane.b32.xlu0 %v345, 127
        %v360 = vpop.permute.xlu0 %359
        %vm361 = vcmask 1039360
        %v362 = vsel %vm361, %v352, %v354
        %v363 = vsel %vm361, %v354, %v356
        %v364 = vsel %vm361, %v356, %v358
        %v365 = vsel %vm361, %v358, %v360
        %370 = vst [vmem:[#allocation3 + $0x20] sm:$0xff] %v362
        %371 = vst [vmem:[#allocation3 + $0x28] sm:$0xff] %v363
        %372 = vst [vmem:[#allocation3 + $0x30] sm:$0xff] %v364
        %373 = vst [vmem:[#allocation3 + $0x38] sm:$0xff] %v365
        %v374 = vld [vmem:[#allocation2] sm:$0xff]
        %v375 = vld [vmem:[#allocation2 + $0x8] sm:$0xff]
        %v376 = vld [vmem:[#allocation2 + $0x10] sm:$0xff]
        %v377 = vld [vmem:[#allocation2 + $0x18] sm:$0xff]
        %v378 = vld [vmem:[#allocation2 + $0x20] sm:$0xff]
        %384 = vrot.lane.b32.xlu0 %v374, 126
        %v385 = vpop.permute.xlu0 %384
        %386 = vrot.lane.b32.xlu0 %v375, 126
        %v387 = vpop.permute.xlu0 %386
        %388 = vrot.lane.b32.xlu0 %v376, 126
        %v389 = vpop.permute.xlu0 %388
        %390 = vrot.lane.b32.xlu0 %v377, 126
        %v391 = vpop.permute.xlu0 %390
        %392 = vrot.lane.b32.xlu0 %v378, 126
        %v393 = vpop.permute.xlu0 %392
        %vm394 = vcmask 1031168
        %v395 = vsel %vm394, %v385, %v387
        %v396 = vsel %vm394, %v387, %v389
        %v397 = vsel %vm394, %v389, %v391
        %v398 = vsel %vm394, %v391, %v393
        %403 = vst [vmem:[#allocation3 + $0x40] sm:$0xff] %v395
        %404 = vst [vmem:[#allocation3 + $0x48] sm:$0xff] %v396
        %405 = vst [vmem:[#allocation3 + $0x50] sm:$0xff] %v397
        %406 = vst [vmem:[#allocation3 + $0x58] sm:$0xff] %v398
        %v407 = vld [vmem:[#allocation2] sm:$0xff]
        %v408 = vld [vmem:[#allocation2 + $0x8] sm:$0xff]
        %v409 = vld [vmem:[#allocation2 + $0x10] sm:$0xff]
        %v410 = vld [vmem:[#allocation2 + $0x18] sm:$0xff]
        %v411 = vld [vmem:[#allocation2 + $0x20] sm:$0xff]
        %417 = vrot.lane.b32.xlu0 %v407, 125
        %v418 = vpop.permute.xlu0 %417
        %419 = vrot.lane.b32.xlu0 %v408, 125
        %v420 = vpop.permute.xlu0 %419
        %421 = vrot.lane.b32.xlu0 %v409, 125
        %v422 = vpop.permute.xlu0 %421
        %423 = vrot.lane.b32.xlu0 %v410, 125
        %v424 = vpop.permute.xlu0 %423
        %425 = vrot.lane.b32.xlu0 %v411, 125
        %v426 = vpop.permute.xlu0 %425
        %vm427 = vcmask 1022976
        %v428 = vsel %vm427, %v418, %v420
        %v429 = vsel %vm427, %v420, %v422
        %v430 = vsel %vm427, %v422, %v424
        %v431 = vsel %vm427, %v424, %v426
        %436 = vst [vmem:[#allocation3 + $0x60] sm:$0xff] %v428
        %437 = vst [vmem:[#allocation3 + $0x68] sm:$0xff] %v429
        %438 = vst [vmem:[#allocation3 + $0x70] sm:$0xff] %v430
        %439 = vst [vmem:[#allocation3 + $0x78] sm:$0xff] %v431
        %v440 = vld [vmem:[#allocation2] sm:$0xff]
        %v441 = vld [vmem:[#allocation2 + $0x8] sm:$0xff]
        %v442 = vld [vmem:[#allocation2 + $0x10] sm:$0xff]
        %v443 = vld [vmem:[#allocation2 + $0x18] sm:$0xff]
        %v444 = vld [vmem:[#allocation2 + $0x20] sm:$0xff]
        %450 = vrot.lane.b32.xlu0 %v440, 124
        %v451 = vpop.permute.xlu0 %450
        %452 = vrot.lane.b32.xlu0 %v441, 124
        %v453 = vpop.permute.xlu0 %452
        %454 = vrot.lane.b32.xlu0 %v442, 124
        %v455 = vpop.permute.xlu0 %454
        %456 = vrot.lane.b32.xlu0 %v443, 124
        %v457 = vpop.permute.xlu0 %456
        %458 = vrot.lane.b32.xlu0 %v444, 124
        %v459 = vpop.permute.xlu0 %458
        %vm460 = vcmask 1014784
        %v461 = vsel %vm460, %v451, %v453
        %v462 = vsel %vm460, %v453, %v455
        %v463 = vsel %vm460, %v455, %v457
        %v464 = vsel %vm460, %v457, %v459
        %469 = vst [vmem:[#allocation3 + $0x80] sm:$0xff] %v461
        %470 = vst [vmem:[#allocation3 + $0x88] sm:$0xff] %v462
        %471 = vst [vmem:[#allocation3 + $0x90] sm:$0xff] %v463
        %472 = vst [vmem:[#allocation3 + $0x98] sm:$0xff] %v464
        %v473 = vld [vmem:[#allocation2] sm:$0xff]
        %v474 = vld [vmem:[#allocation2 + $0x8] sm:$0xff]
        %v475 = vld [vmem:[#allocation2 + $0x10] sm:$0xff]
        %v476 = vld [vmem:[#allocation2 + $0x18] sm:$0xff]
        %v477 = vld [vmem:[#allocation2 + $0x20] sm:$0xff]
        %483 = vrot.lane.b32.xlu0 %v473, 123
        %v484 = vpop.permute.xlu0 %483
        %485 = vrot.lane.b32.xlu0 %v474, 123
        %v486 = vpop.permute.xlu0 %485
        %487 = vrot.lane.b32.xlu0 %v475, 123
        %v488 = vpop.permute.xlu0 %487
        %489 = vrot.lane.b32.xlu0 %v476, 123
        %v490 = vpop.permute.xlu0 %489
        %491 = vrot.lane.b32.xlu0 %v477, 123
        %v492 = vpop.permute.xlu0 %491
        %vm493 = vcmask 1006592
        %v494 = vsel %vm493, %v484, %v486
        %v495 = vsel %vm493, %v486, %v488
        %v496 = vsel %vm493, %v488, %v490
        %v497 = vsel %vm493, %v490, %v492
        %502 = vst [vmem:[#allocation3 + $0xa0] sm:$0xff] %v494
        %503 = vst [vmem:[#allocation3 + $0xa8] sm:$0xff] %v495
        %504 = vst [vmem:[#allocation3 + $0xb0] sm:$0xff] %v496
        %505 = vst [vmem:[#allocation3 + $0xb8] sm:$0xff] %v497
        %v506 = vld [vmem:[#allocation2] sm:$0xff]
        %v507 = vld [vmem:[#allocation2 + $0x8] sm:$0xff]
        %v508 = vld [vmem:[#allocation2 + $0x10] sm:$0xff]
        %v509 = vld [vmem:[#allocation2 + $0x18] sm:$0xff]
        %v510 = vld [vmem:[#allocation2 + $0x20] sm:$0xff]
        %516 = vrot.lane.b32.xlu0 %v506, 122
        %v517 = vpop.permute.xlu0 %516
        %518 = vrot.lane.b32.xlu0 %v507, 122
        %v519 = vpop.permute.xlu0 %518
        %520 = vrot.lane.b32.xlu0 %v508, 122
        %v521 = vpop.permute.xlu0 %520
        %522 = vrot.lane.b32.xlu0 %v509, 122
        %v523 = vpop.permute.xlu0 %522
        %524 = vrot.lane.b32.xlu0 %v510, 122
        %v525 = vpop.permute.xlu0 %524
        %vm526 = vcmask 998400
        %v527 = vsel %vm526, %v517, %v519
        %v528 = vsel %vm526, %v519, %v521
        %v529 = vsel %vm526, %v521, %v523
        %v530 = vsel %vm526, %v523, %v525
        %535 = vst [vmem:[#allocation3 + $0xc0] sm:$0xff] %v527
        %536 = vst [vmem:[#allocation3 + $0xc8] sm:$0xff] %v528
        %537 = vst [vmem:[#allocation3 + $0xd0] sm:$0xff] %v529
        %538 = vst [vmem:[#allocation3 + $0xd8] sm:$0xff] %v530
        %v539 = vld [vmem:[%s2] sm:$0xf]
        %v540 = vld [vmem:[%s2 + $0x4] sm:$0xf]
        %v541 = vld [vmem:[#allocation3] sm:$0xff]
        %v542 = vld [vmem:[#allocation3 + $0x8] sm:$0xff]
        %v543 = vld [vmem:[#allocation3 + $0x10] sm:$0xff]
        %v544 = vld [vmem:[#allocation3 + $0x18] sm:$0xff]
        %v545 = vld [vmem:[#allocation3 + $0x20] sm:$0xff]
        %v546 = vld [vmem:[#allocation3 + $0x28] sm:$0xff]
        %v547 = vld [vmem:[#allocation3 + $0x30] sm:$0xff]
        %v548 = vld [vmem:[#allocation3 + $0x38] sm:$0xff]
        %v549 = vld [vmem:[#allocation3 + $0x40] sm:$0xff]
        %v550 = vld [vmem:[#allocation3 + $0x48] sm:$0xff]
        %v551 = vld [vmem:[#allocation3 + $0x50] sm:$0xff]
        %v552 = vld [vmem:[#allocation3 + $0x58] sm:$0xff]
        %v553 = vld [vmem:[#allocation3 + $0x60] sm:$0xff]
        %v554 = vld [vmem:[#allocation3 + $0x68] sm:$0xff]
        %v555 = vld [vmem:[#allocation3 + $0x70] sm:$0xff]
        %v556 = vld [vmem:[#allocation3 + $0x78] sm:$0xff]
        %v557 = vld [vmem:[#allocation3 + $0x80] sm:$0xff]
        %v558 = vld [vmem:[#allocation3 + $0x88] sm:$0xff]
        %v559 = vld [vmem:[#allocation3 + $0x90] sm:$0xff]
        %v560 = vld [vmem:[#allocation3 + $0x98] sm:$0xff]
        %v561 = vld [vmem:[#allocation3 + $0xa0] sm:$0xff]
        %v562 = vld [vmem:[#allocation3 + $0xa8] sm:$0xff]
        %v563 = vld [vmem:[#allocation3 + $0xb0] sm:$0xff]
        %v564 = vld [vmem:[#allocation3 + $0xb8] sm:$0xff]
        %v565 = vld [vmem:[#allocation3 + $0xc0] sm:$0xff]
        %v566 = vld [vmem:[#allocation3 + $0xc8] sm:$0xff]
        %v567 = vld [vmem:[#allocation3 + $0xd0] sm:$0xff]
        %v568 = vld [vmem:[#allocation3 + $0xd8] sm:$0xff]
        %v569 = vpack.c.bf16 %v545, %v541
        %v570 = vpack.c.bf16 %v546, %v542
        %v571 = vpack.c.bf16 %v547, %v543
        %v572 = vpack.c.bf16 %v548, %v544
        %v573 = vpack.c.bf16 %v553, %v549
        %v574 = vpack.c.bf16 %v554, %v550
        %v575 = vpack.c.bf16 %v555, %v551
        %v576 = vpack.c.bf16 %v556, %v552
        %v577 = vpack.c.bf16 %v561, %v557
        %v578 = vpack.c.bf16 %v562, %v558
        %v579 = vpack.c.bf16 %v563, %v559
        %v580 = vpack.c.bf16 %v564, %v560
        %v581 = vpack.c.bf16 %v565, %v565
        %v582 = vpack.c.bf16 %v566, %v566
        %v583 = vpack.c.bf16 %v567, %v567
        %v584 = vpack.c.bf16 %v568, %v568
        %v585 = vld [vmem:[%s3] sm:$0xff]
        %v586 = vld [vmem:[%s3 + $0x8] sm:$0xff]
        %588 = vset.pattern.permute.xlu0 0
        %589 = vperm.xlu0 %588, %v585
        %v590 = vpop.permute.xlu0 %589
        %593 = vset.pattern.permute.xlu0 0
        %594 = vperm.xlu0 %593, %v586
        %v595 = vpop.permute.xlu0 %594
        %v599 = vunpack.c.l.b16 %v539
        %v600 = vunpack.c.l.b16 %v540
        %v601 = vpack.c.b16 %v600, %v599
        %vm602 = vcmask 457728
        %v604 = vsel %vm602, %v601, 0
        %vm606 = vcmask 1043456
        %v608 = vsel %vm606, %v581, 0
        %v611 = vsel %vm606, %v582, 0
        %v614 = vsel %vm606, %v583, 0
        %v617 = vsel %vm606, %v584, 0
        %619 = vmatpush.bf16.msra.mxu0 0
        %620 = vmatpush.bf16.msra.mxu0 0
        %621 = vmatpush.bf16.msra.mxu0 0
        %622 = vmatpush.bf16.msra.mxu0 0
        %623 = vmatpush.bf16.msra.mxu0 %v608
        %624 = vmatpush.bf16.msra.mxu0 %v577
        %625 = vmatpush.bf16.msra.mxu0 %v573
        %626 = vmatpush.bf16.msra.mxu0 %v569
        %627 = vmatmul.bf16.gmra.mxu0 %v604
        %v628 = vpop.f32.mrf.mxu0
        %v629 = vadd.f32 %v590, %v628
        %v630 = vpop.f32.mrf.mxu0
        %v631 = vadd.f32 %v595, %v630
        %632 = vdwg.mxu0
        %633 = vmatpush.bf16.msra.mxu0 0
        %634 = vmatpush.bf16.msra.mxu0 0
        %635 = vmatpush.bf16.msra.mxu0 0
        %636 = vmatpush.bf16.msra.mxu0 0
        %637 = vmatpush.bf16.msra.mxu0 %v611
        %638 = vmatpush.bf16.msra.mxu0 %v578
        %639 = vmatpush.bf16.msra.mxu0 %v574
        %640 = vmatpush.bf16.msra.mxu0 %v570
        %641 = vmatmul.bf16.gmra.mxu0 %v604
        %v642 = vpop.f32.mrf.mxu0
        %v643 = vadd.f32 %v590, %v642
        %v644 = vpop.f32.mrf.mxu0
        %v645 = vadd.f32 %v595, %v644
        %646 = vdwg.mxu0
        %647 = vmatpush.bf16.msra.mxu0 0
        %648 = vmatpush.bf16.msra.mxu0 0
        %649 = vmatpush.bf16.msra.mxu0 0
        %650 = vmatpush.bf16.msra.mxu0 0
        %651 = vmatpush.bf16.msra.mxu0 %v614
        %652 = vmatpush.bf16.msra.mxu0 %v579
        %653 = vmatpush.bf16.msra.mxu0 %v575
        %654 = vmatpush.bf16.msra.mxu0 %v571
        %655 = vmatmul.bf16.gmra.mxu0 %v604
        %v656 = vpop.f32.mrf.mxu0
        %v657 = vadd.f32 %v590, %v656
        %v658 = vpop.f32.mrf.mxu0
        %v659 = vadd.f32 %v595, %v658
        %660 = vdwg.mxu0
        %661 = vmatpush.bf16.msra.mxu0 0
        %662 = vmatpush.bf16.msra.mxu0 0
        %663 = vmatpush.bf16.msra.mxu0 0
        %664 = vmatpush.bf16.msra.mxu0 0
        %665 = vmatpush.bf16.msra.mxu0 %v617
        %666 = vmatpush.bf16.msra.mxu0 %v580
        %667 = vmatpush.bf16.msra.mxu0 %v576
        %668 = vmatpush.bf16.msra.mxu0 %v572
        %669 = vmatmul.bf16.gmra.mxu0 %v604
        %v670 = vpop.f32.mrf.mxu0
        %v671 = vadd.f32 %v590, %v670
        %v672 = vpop.f32.mrf.mxu0
        %v673 = vadd.f32 %v595, %v672
        %674 = vdwg.mxu0
        %v675 = vld [vmem:[%s4] sm:$0xff]
        %v676 = vld [vmem:[%s4 + $0x8] sm:$0xff]
        %vm677 = vcmp.ge.f32.partialorder %v629, 0.0
        %vm678 = vcmp.ge.f32.partialorder %v643, 0.0
        %vm679 = vcmp.ge.f32.partialorder %v657, 0.0
        %vm680 = vcmp.ge.f32.partialorder %v671, 0.0
        %vm681 = vcmp.ge.f32.partialorder %v631, 0.0
        %vm682 = vcmp.ge.f32.partialorder %v645, 0.0
        %vm683 = vcmp.ge.f32.partialorder %v659, 0.0
        %vm684 = vcmp.ge.f32.partialorder %v673, 0.0
        %686 = vset.pattern.permute.xlu0 0
        %687 = vperm.xlu0 %686, %v675
        %v688 = vpop.permute.xlu0 %687
        %691 = vset.pattern.permute.xlu0 0
        %692 = vperm.xlu0 %691, %v676
        %v693 = vpop.permute.xlu0 %692
        %v695 = vmul.f32 %v688, %v629
        %v696 = vmul.f32 %v688, %v643
        %v697 = vmul.f32 %v688, %v657
        %v698 = vmul.f32 %v688, %v671
        %v699 = vmul.f32 %v693, %v631
        %v700 = vmul.f32 %v693, %v645
        %v701 = vmul.f32 %v693, %v659
        %v702 = vmul.f32 %v693, %v673
        %v703 = vsel %vm677, %v629, %v695
        %v704 = vsel %vm678, %v643, %v696
        %v705 = vsel %vm679, %v657, %v697
        %v706 = vsel %vm680, %v671, %v698
        %v707 = vsel %vm681, %v631, %v699
        %v708 = vsel %vm682, %v645, %v700
        %v709 = vsel %vm683, %v659, %v701
        %v710 = vsel %vm684, %v673, %v702
        %711 = vst [vmem:[%s287] sm:$0xff] %v703
        %712 = vst [vmem:[%s287 + $0x8] sm:$0xff] %v704
        %713 = vst [vmem:[%s287 + $0x10] sm:$0xff] %v705
        %714 = vst [vmem:[%s287 + $0x18] sm:$0xff] %v706
        %715 = vst [vmem:[%s287 + $0x20] sm:$0xff] %v707
        %716 = vst [vmem:[%s287 + $0x28] sm:$0xff] %v708
        %717 = vst [vmem:[%s287 + $0x30] sm:$0xff] %v709
        %718 = vst [vmem:[%s287 + $0x38] sm:$0xff] %v710
        %s719 = sand.u32 %s164, 1
        %s720 = scalar_lea.sflag [#allocation5], %s719
        %s721 = sand.u32 %s164, 1
        %s722 = smul.addr %s721, 64
        %s723 = scalar_lea.vmem [#allocation4], %s722
        // Predicated region
        $region41: #{_lambda_.1} parent=39 // pred_check
          %p724 = pneg %p174
        $region42: #{_lambda_.1} parent=39 // pred_check_branch
          %726 = sbr.rel (%p724) target = $region44
        $region43: #{_lambda_.1} parent=39 // pred_region
          %s727 = smul.u32 4, %s24
          %729 = vsyncadd %s720, 0
          %s730 = smul.addr %s23, 8
          %s731 = sadd.s32 %s727, %s730
          %s732 = smul.addr %s731, 8
          %s733 = scalar_lea.hbm %s5, %s732
          %s734 = sshll.u32 %s723, 4
          %s735 = int_to_ptr.vmem [resolvable:$true] %s734
          %s736 = sshll.u32 %s733, 4
          %s737 = int_to_ptr.hbm [resolvable:$true] %s736
          %742 = dma.vmem_to_hbm [thread:$0]  %s735, 1024, %s737, %s720, 512, 512, 32
        $region44: #{_lambda_.1} parent=39 // pred_fallthru
          _
      $region40: #{_lambda_.1} parent=5 // pred_fallthru
        _
      %p743 = scmp.le.s32.totalorder 2, %s14
      // Predicated region
      $region45: #{_lambda_.1} parent=5 // pred_check
        %p744 = pneg %p743
      $region46: #{_lambda_.1} parent=5 // pred_check_branch
        %746 = sbr.rel (%p744) target = $region48
      $region47: #{_lambda_.1} parent=5 // pred_region
        %s747 = ssub.s32 %s14, 2
        // Predicated region
        $region49: #{_lambda_.1} parent=47 // pred_check
          %p748 = pneg %p180
        $region50: #{_lambda_.1} parent=47 // pred_check_branch
          %750 = sbr.rel (%p748) target = $region52
        $region51: #{_lambda_.1} parent=47 // pred_region
          %s751 = sand.u32 %s165, 1
          %s752 = scalar_lea.sflag [#allocation5], %s751
          %s753 = sand.u32 %s165, 1
          %s754 = smul.addr %s753, 64
          %s755 = scalar_lea.vmem [#allocation4], %s754
          %757 = dma.done %s752, 1024
        $region52: #{_lambda_.1} parent=47 // pred_fallthru
          _
      $region48: #{_lambda_.1} parent=5 // pred_fallthru
        _
    $region6: #{_lambda_.1} parent=1 // loop_footer
      %s18 = sadd.s32 1, %s14
    $region7: #{_lambda_.1} parent=1 // loop_footer_branch
      %13 = sbr.rel target = $region3
    $region8: #{_lambda_.1} parent=1 // loop_exit
      _
    %758 = vsyncpa [#allocation5], 1
    %s759 = scalar_lea.sflag [#allocation5], 1
    %760 = vsyncpa %s759, 1

</llo_original>
